<compile_context>
chip_gen: v6e
topology: v6e:2x2x1
jax: 0.10.0
libtpu: 0.0.40
codegen_flags: <defaults>
</compile_context>

<pallas_src>
import jax
import jax.numpy as jnp
from jax.experimental import pallas as pl
from jax.experimental.pallas import tpu as pltpu


def _patch_unembed_kernel(x_ref, o_ref):
    # x_ref block: (1, tn, C); o_ref block: (1, C, tn).
    # swapaxes (not .T) keeps this correct for any leading-block shape.
    o_ref[...] = jnp.swapaxes(x_ref[...], -1, -2)


def _choose_token_tile(n_tokens, channels, itemsize,
                       vmem_budget_bytes=8 << 20, min_total_steps=4, batch=1):
    """Pick tn (token-axis tile): multiple of 128, divides N, VMEM-capped.

    Per grid step the kernel holds an input (tn, C) block and an output
    (C, tn) block, each double-buffered -> 4 * tn * C * itemsize bytes.
    """
    if n_tokens % 128 != 0:
        # Full-extent block is always legal; fall back (rare for SR sizes).
        return n_tokens

    # VMEM cap (keeps v7x 64 MiB / 32 MiB scoped default comfortable).
    cap = (vmem_budget_bytes // (4 * channels * itemsize)) // 128 * 128
    cap = max(128, cap)
    tn = min(n_tokens, cap)
    tn = (tn // 128) * 128
    # Largest multiple of 128 <= cap that divides N.
    while tn > 128 and n_tokens % tn != 0:
        tn -= 128
    if n_tokens % tn != 0:
        return n_tokens

    # Prefer >= min_total_steps grid steps so DMA pipelining / both v7x TCs
    # actually engage (harmless at toy sizes).
    while tn > 128 and batch * (n_tokens // tn) < min_total_steps:
        half = (tn // 2 // 128) * 128
        if half < 128 or n_tokens % half != 0:
            break
        tn = half
    return tn


def patch_unembed_pallas(x, x_size):
    """x: (B, N, C); x_size: (H, W) with H * W == N.  Returns (B, C, H, W)."""
    H, W = x_size
    B, N, C = x.shape
    assert N == H * W, "token count must equal H*W"

    tn = _choose_token_tile(N, C, x.dtype.itemsize, batch=B)
    n_steps = N // tn

    out_cn = pl.pallas_call(
        _patch_unembed_kernel,
        out_shape=jax.ShapeDtypeStruct((B, C, N), x.dtype),
        grid=(B, n_steps),
        in_specs=[pl.BlockSpec((1, tn, C), lambda b, n: (b, n, 0))],
        # Lane-dense output slab: last dim tn is a multiple of 128 (or == N).
        out_specs=pl.BlockSpec((1, C, tn), lambda b, n: (b, 0, n)),
        compiler_params=pltpu.CompilerParams(
            dimension_semantics=("parallel", "parallel")),
    )(x)

    # Metadata-only split of the token axis back into spatial dims (kept in
    # the wrapper so the kernel's store stays lane-dense).
    return out_cn.reshape(B, C, H, W)


def patch_unembed_reference(x, x_size):
    """Pure-JAX reference matching the PyTorch forward."""
    H, W = x_size
    B, N, C = x.shape
    return jnp.transpose(x, (0, 2, 1)).reshape(B, C, H, W)


if __name__ == "__main__":
    # Small smoke-test shapes (do NOT tune/benchmark here; at 64 KiB total
    # the pallas_call fixed cost dominates — benchmark at real SR sizes).
    B = 2
    embed_dim = 32          # C
    H = W = 16              # spatial size -> N = 256 tokens
    N = H * W

    key = jax.random.PRNGKey(0)
    x = jax.random.normal(key, (B, N, embed_dim), dtype=jnp.float32)

    fn = jax.jit(patch_unembed_pallas, static_argnums=(1,))
    out = jax.block_until_ready(fn(x, (H, W)))

    ref = patch_unembed_reference(x, (H, W))
    assert out.shape == (B, embed_dim, H, W)
    assert jnp.array_equal(out, ref), "mismatch vs reference"

    print("KERNEL_OK")
</pallas_src>

<mosaic_0001>
module attributes {stable_mosaic.version = 11 : i64} {
  func.func @_patch_unembed_kernel(%arg0: i32, %arg1: i32, %arg2: memref<1x128x32xf32, #tpu.memory_space<vmem>>, %arg3: memref<1x32x128xf32, #tpu.memory_space<vmem>>) attributes {dimension_semantics = [#tpu.dimension_semantics<parallel>, #tpu.dimension_semantics<parallel>], iteration_bounds = array<i64: 2, 2>, scalar_prefetch = 0 : i64, scratch_operands = 0 : i64, tpu.core_type = #tpu.core_type<tc>, window_params = [{transform_indices = @transform_0, window_bounds = array<i64: 1, 128, 32>}, {transform_indices = @transform_1, window_bounds = array<i64: 1, 32, 128>}]} {
    %c0 = arith.constant 0 : index
    %c0_0 = arith.constant 0 : index
    %c0_1 = arith.constant 0 : index
    %0 = vector.load %arg2[%c0, %c0_0, %c0_1] : memref<1x128x32xf32, #tpu.memory_space<vmem>>, vector<1x128x32xf32>
    %1 = tpu.transpose %0, [0, 2, 1] : vector<1x128x32xf32> -> vector<1x32x128xf32>
    %c0_2 = arith.constant 0 : index
    %c0_3 = arith.constant 0 : index
    %c0_4 = arith.constant 0 : index
    %2 = vector.load %arg3[%c0_2, %c0_3, %c0_4] : memref<1x32x128xf32, #tpu.memory_space<vmem>>, vector<1x32x128xf32>
    tpu.vector_store %arg3[%c0_2, %c0_3, %c0_4], %1 {strides = array<i32>} : memref<1x32x128xf32, #tpu.memory_space<vmem>>, vector<1x32x128xf32>,
    return
  }
  func.func @transform_0(%arg0: i32, %arg1: i32) -> (i32, i32, i32) {
    %c0_i32 = arith.constant 0 : i32
    %c0_i32_0 = arith.constant 0 : i32
    return %arg0, %arg1, %c0_i32 : i32, i32, i32
  }
  func.func @transform_1(%arg0: i32, %arg1: i32) -> (i32, i32, i32) {
    %c0_i32 = arith.constant 0 : i32
    %c0_i32_0 = arith.constant 0 : i32
    return %arg0, %c0_i32, %arg1 : i32, i32, i32
  }
}

</mosaic_0001>

<llo_original>
// kernel: patch_unembed_pallas.1
$region0: #{patch_unembed_pallas.1}
  #allocation0 [shape = 'u32[]', space=smem, size = 0x4, offset = 0x4, fixed_abs, tag = 'smem constant byte address 0x4 - core index']
  #allocation1 [shape = 'u32[144,128]{1,0:T(1,128)}', space=vmem, size = 0x12000, scoped, tag = 'internal scratch']
  %s0 = inlined_call_operand.vmem [shape: f32[2,256,32], index: 0, kind: input, shape index: {}]
  %s1 = inlined_call_operand.vmem [shape: f32[2,32,256], index: 1, kind: output, shape index: {}]
  %s2 = sld [smem:[#allocation0]]
  $region71: #{patch_unembed_pallas.1} parent=0
    _
  %s4 = ssub.s32 1, %s2
  %s5 = scalar_select 0, %s4, %s2
  $region1: #{patch_unembed_pallas.1} parent=0
    #allocation2 [shape = 'u8[32768]{0}', space=vmem, size = 0x8000, scoped, tag = 'output window, operand 0']
    loop: start=0, step=1, limit=6
    $region2: #{patch_unembed_pallas.1} parent=1 // loop_pre_header
      _
    $region3: #{patch_unembed_pallas.1} parent=1 // loop_header
      %s7 = sphi 0, %s11
      %p8 = scmp.ge.s32.totalorder %s7, 6
      %s14 = sphi 0, %s26
      %s15 = sphi 0, %s22
      %s16 = sphi 0, %s14
      %s17 = sphi 0, %s15
      %s18 = sphi 0, %s16
      %s19 = sphi 0, %s17
      %s31 = sphi 0, %s33
      %s34 = sphi 0, %s31
      %s35 = sphi 0, %s34
      %s51 = sphi 0, %s35
      %s59 = sphi 0, %s61
      %s62 = sphi 0, %s59
      %s63 = sphi 0, %s62
      %s79 = sphi 0, %s63
    $region4: #{patch_unembed_pallas.1} parent=1 // loop_header_branch
      %10 = sbr.rel (%p8) target = $region8
    $region5: #{patch_unembed_pallas.1} parent=1 // loop_body
      %s12 = ssub.s32 %s7, 1
      %s13 = ssub.s32 %s7, 2
      %s20 = sadd.s32 1, %s15
      %p21 = scmp.ge.s32.totalorder %s20, 2
      %s22 = scalar_select %p21, 0, %s20
      %s23 = sadd.s32 1, %s14
      %s24 = scalar_select %p21, %s23, %s14
      %p25 = scmp.ge.s32.totalorder %s24, 2
      %s26 = scalar_select %p25, 0, %s24
      %s27 = ssub.s32 %s14, %s26
      %s28 = ssub.s32 %s15, %s22
      %s29 = sor.u32 %s27, %s28
      %p30 = scmp.eq.s32.totalorder %s29, 0
      %s32 = sadd.s32 %s31, 1
      %s33 = scalar_select %p30, %s31, %s32
      %p36 = pneg %p30
      %p37 = scmp.eq.s32.totalorder %s7, 3
      %p38 = por %p36, %p37
      %p39 = scmp.ne.s32.totalorder %s31, %s34
      %p40 = scmp.eq.s32.totalorder %s7, 0
      %p41 = por %p39, %p40
      %p42 = scmp.ne.s32.totalorder %s31, %s34
      %p43 = scmp.eq.s32.totalorder %s12, 3
      %p44 = por %p42, %p43
      %p45 = scmp.ne.s32.totalorder %s34, %s35
      %p46 = scmp.eq.s32.totalorder %s12, 0
      %p47 = por %p45, %p46
      %p48 = scmp.ne.s32.totalorder %s34, %s35
      %p49 = scmp.eq.s32.totalorder %s13, 3
      %p50 = por %p48, %p49
      %p52 = scmp.ne.s32.totalorder %s35, %s51
      %p53 = scmp.eq.s32.totalorder %s13, 0
      %p54 = por %p52, %p53
      %s55 = ssub.s32 %s14, %s26
      %s56 = ssub.s32 %s15, %s22
      %s57 = sor.u32 %s55, %s56
      %p58 = scmp.eq.s32.totalorder %s57, 0
      %s60 = sadd.s32 %s59, 1
      %s61 = scalar_select %p58, %s59, %s60
      %p64 = pneg %p58
      %p65 = scmp.eq.s32.totalorder %s7, 3
      %p66 = por %p64, %p65
      %p67 = scmp.ne.s32.totalorder %s59, %s62
      %p68 = scmp.eq.s32.totalorder %s7, 0
      %p69 = por %p67, %p68
      %p70 = scmp.ne.s32.totalorder %s59, %s62
      %p71 = scmp.eq.s32.totalorder %s12, 3
      %p72 = por %p70, %p71
      %p73 = scmp.ne.s32.totalorder %s62, %s63
      %p74 = scmp.eq.s32.totalorder %s12, 0
      %p75 = por %p73, %p74
      %p76 = scmp.ne.s32.totalorder %s62, %s63
      %p77 = scmp.eq.s32.totalorder %s13, 3
      %p78 = por %p76, %p77
      %p80 = scmp.ne.s32.totalorder %s63, %s79
      %p81 = scmp.eq.s32.totalorder %s13, 0
      %p82 = por %p80, %p81
      %p83 = scmp.le.s32.totalorder 1, %s7
      %p84 = scmp.lt.s32.totalorder %s7, 5
      %p85 = pnand %p83, %p84
      %p86 = pneg %p85
      // Predicated region
      $region9: #{patch_unembed_pallas.1} parent=5 // pred_check
        _
      $region10: #{patch_unembed_pallas.1} parent=5 // pred_check_branch
        %88 = sbr.rel (%p85) target = $region12
      $region11: #{patch_unembed_pallas.1} parent=5 // pred_region
        %s89 = ssub.s32 %s7, 1
      $region12: #{patch_unembed_pallas.1} parent=5 // pred_fallthru
        _
      %p90 = scmp.lt.s32.totalorder %s7, 4
      // Predicated region
      $region13: #{patch_unembed_pallas.1} parent=5 // pred_check
        %p91 = pneg %p90
      $region14: #{patch_unembed_pallas.1} parent=5 // pred_check_branch
        %93 = sbr.rel (%p91) target = $region16
      $region15: #{patch_unembed_pallas.1} parent=5 // pred_region
        // Predicated region
        $region17: #{patch_unembed_pallas.1} parent=15 // pred_check
          %p94 = pneg %p41
        $region18: #{patch_unembed_pallas.1} parent=15 // pred_check_branch
          %96 = sbr.rel (%p94) target = $region20
        $region19: #{patch_unembed_pallas.1} parent=15 // pred_region
          %s97 = smul.u32 16, %s15
          %p98 = scmp.lt.s32.totalorder %s14, 1
          %s99 = scalar_select %p98, %s14, 1
          %p100 = scmp.lt.s32.totalorder %s97, 31
          %s101 = scalar_select %p100, %s97, 31
          %s102 = smul.addr %s99, 32
          %s103 = sadd.s32 %s101, %s102
          %s104 = smul.addr %s103, 8
          %s105 = scalar_lea.vmem %s0, %s104
          %s106 = smul.u32 16, %s15
        $region20: #{patch_unembed_pallas.1} parent=15 // pred_fallthru
          _
      $region16: #{patch_unembed_pallas.1} parent=5 // pred_fallthru
        _
      %p107 = scmp.le.s32.totalorder 1, %s7
      %p108 = scmp.lt.s32.totalorder %s7, 5
      %p109 = pnand %p107, %p108
      %p110 = pneg %p109
      // Predicated region
      $region21: #{patch_unembed_pallas.1} parent=5 // pred_check
        _
      $region22: #{patch_unembed_pallas.1} parent=5 // pred_check_branch
        %112 = sbr.rel (%p109) target = $region24
      $region23: #{patch_unembed_pallas.1} parent=5 // pred_region
        %s113 = ssub.s32 %s7, 1
        %s114 = smul.u32 16, %s17
        %p115 = scmp.lt.s32.totalorder %s16, 1
        %s116 = scalar_select %p115, %s16, 1
        %p117 = scmp.lt.s32.totalorder %s114, 31
        %s118 = scalar_select %p117, %s114, 31
        %s119 = smul.addr %s116, 32
        %s120 = sadd.s32 %s118, %s119
        %s121 = smul.addr %s120, 8
        %s122 = scalar_lea.vmem %s0, %s121
        %p123 = pneg %p47
        %p124 = pneg %p44
        %p125 = pneg %p75
        %p126 = pneg %p72
        %s127 = sand.u32 %s62, 1
        %s128 = sand.u32 %s62, 1
        %s129 = smul.addr %s128, 32
        %s130 = scalar_lea.vmem [#allocation2], %s129
        %s131 = smul.u32 16, %s17
        %p132 = scmp.lt.s32.totalorder %s16, 1
        %s133 = scalar_select %p132, %s16, 1
        %p134 = scmp.lt.s32.totalorder %s131, 31
        %s135 = scalar_select %p134, %s131, 31
        %s136 = smul.addr %s133, 32
        %s137 = sadd.s32 %s135, %s136
        %s138 = smul.addr %s137, 8
        %s139 = scalar_lea.vmem %s0, %s138
        %s140 = smul.u32 16, %s17
        %v141 = vld [vmem:[%s139] sm:$0xff]
        %v142 = vld [vmem:[%s139 + $0x8] sm:$0xff]
        %v143 = vld [vmem:[%s139 + $0x10] sm:$0xff]
        %v144 = vld [vmem:[%s139 + $0x18] sm:$0xff]
        %v145 = vld [vmem:[%s139 + $0x20] sm:$0xff]
        %v146 = vld [vmem:[%s139 + $0x28] sm:$0xff]
        %v147 = vld [vmem:[%s139 + $0x30] sm:$0xff]
        %v148 = vld [vmem:[%s139 + $0x38] sm:$0xff]
        %v149 = vld [vmem:[%s139 + $0x40] sm:$0xff]
        %v150 = vld [vmem:[%s139 + $0x48] sm:$0xff]
        %v151 = vld [vmem:[%s139 + $0x50] sm:$0xff]
        %v152 = vld [vmem:[%s139 + $0x58] sm:$0xff]
        %v153 = vld [vmem:[%s139 + $0x60] sm:$0xff]
        %v154 = vld [vmem:[%s139 + $0x68] sm:$0xff]
        %v155 = vld [vmem:[%s139 + $0x70] sm:$0xff]
        %v156 = vld [vmem:[%s139 + $0x78] sm:$0xff]
        %157 = vxpose.xlu0.b32.start [1/16] %v141, 128
        %158 = vxpose.xlu0.b32.cont [2/16] %v142, 128
        %159 = vxpose.xlu0.b32.cont [3/16] %v143, 128
        %160 = vxpose.xlu0.b32.cont [4/16] %v144, 128
        %161 = vxpose.xlu0.b32.cont [5/16] %v145, 128
        %162 = vxpose.xlu0.b32.cont [6/16] %v146, 128
        %163 = vxpose.xlu0.b32.cont [7/16] %v147, 128
        %164 = vxpose.xlu0.b32.cont [8/16] %v148, 128
        %165 = vxpose.xlu0.b32.cont [9/16] %v149, 128
        %166 = vxpose.xlu0.b32.cont [10/16] %v150, 128
        %167 = vxpose.xlu0.b32.cont [11/16] %v151, 128
        %168 = vxpose.xlu0.b32.cont [12/16] %v152, 128
        %169 = vxpose.xlu0.b32.cont [13/16] %v153, 128
        %170 = vxpose.xlu0.b32.cont [14/16] %v154, 128
        %171 = vxpose.xlu0.b32.cont [15/16] %v155, 128
        %172 = vxpose.xlu0.b32.end [16/16] %v156, 128
        %v173 = vpop.trf.xlu0
        %v174 = vpop.trf.xlu0
        %v175 = vpop.trf.xlu0
        %v176 = vpop.trf.xlu0
        %v177 = vpop.trf.xlu0
        %v178 = vpop.trf.xlu0
        %v179 = vpop.trf.xlu0
        %v180 = vpop.trf.xlu0
        %v181 = vpop.trf.xlu0
        %v182 = vpop.trf.xlu0
        %v183 = vpop.trf.xlu0
        %v184 = vpop.trf.xlu0
        %v185 = vpop.trf.xlu0
        %v186 = vpop.trf.xlu0
        %v187 = vpop.trf.xlu0
        %v188 = vpop.trf.xlu0
        %189 = vst [vmem:[%s130] sm:$0xff] %v173
        %190 = vst [vmem:[%s130 + $0x8] sm:$0xff] %v174
        %191 = vst [vmem:[%s130 + $0x10] sm:$0xff] %v175
        %192 = vst [vmem:[%s130 + $0x18] sm:$0xff] %v176
        %s193 = sand.u32 %s62, 1
        %s194 = sand.u32 %s62, 1
        %s195 = smul.addr %s194, 32
        %s196 = scalar_lea.vmem [#allocation2], %s195
        // Predicated region
        $region25: #{patch_unembed_pallas.1} parent=23 // pred_check
          %p197 = pneg %p72
        $region26: #{patch_unembed_pallas.1} parent=23 // pred_check_branch
          %199 = sbr.rel (%p197) target = $region28
        $region27: #{patch_unembed_pallas.1} parent=23 // pred_region
          %s200 = smul.addr %s16, 8
          %s201 = sadd.s32 %s17, %s200
          %s202 = smul.addr %s201, 8
          %s203 = scalar_lea.vmem %s1, %s202
          // Predicated region
          $region29: #{patch_unembed_pallas.1} parent=27 // pred_check
            _
          $region30: #{patch_unembed_pallas.1} parent=27 // pred_check_branch
            %205 = sbr.rel (0) target = $region32
          $region31: #{patch_unembed_pallas.1} parent=27 // pred_region
            // Predicated region
            $region33: #{patch_unembed_pallas.1} parent=31 // pred_check
              _
            $region34: #{patch_unembed_pallas.1} parent=31 // pred_check_branch
              %207 = sbr.rel (0) target = $region36
            $region35: #{patch_unembed_pallas.1} parent=31 // pred_region
              // Predicated region
              $region48: #{patch_unembed_pallas.1} parent=35 // pred_check
                _
              $region49: #{patch_unembed_pallas.1} parent=35 // pred_check_branch
                %229 = sbr.rel (0) target = $region51
              $region50: #{patch_unembed_pallas.1} parent=35 // pred_region
                loop: start=0, step=1, limit=1
                $region52: #{patch_unembed_pallas.1} parent=50 // loop_pre_header
                  _
                $region53: #{patch_unembed_pallas.1} parent=50 // loop_header
                  %s231 = sphi 0, %s235
                  %p232 = scmp.ge.s32.totalorder %s231, 1
                  %s236 = sphi %s196, %s196
                  %s237 = sphi %s203, %s203
                $region54: #{patch_unembed_pallas.1} parent=50 // loop_header_branch
                  %234 = sbr.rel (%p232) target = $region58
                $region55: #{patch_unembed_pallas.1} parent=50 // loop_body
                  %v238 = vld [vmem:[%s236] sm:$0xff]
                  %239 = vst [vmem:[%s237] sm:$0xff] %v238
                  %v240 = vld [vmem:[%s236 + $0x8] sm:$0xff]
                  %241 = vst [vmem:[%s237 + $0x10] sm:$0xff] %v240
                  %v242 = vld [vmem:[%s236 + $0x10] sm:$0xff]
                  %243 = vst [vmem:[%s237 + $0x20] sm:$0xff] %v242
                  %v244 = vld [vmem:[%s236 + $0x18] sm:$0xff]
                  %245 = vst [vmem:[%s237 + $0x30] sm:$0xff] %v244
                $region56: #{patch_unembed_pallas.1} parent=50 // loop_footer
                  %s235 = sadd.s32 1, %s231
                $region57: #{patch_unembed_pallas.1} parent=50 // loop_footer_branch
                  %230 = sbr.rel target = $region53
                $region58: #{patch_unembed_pallas.1} parent=50 // loop_exit
                  _
              $region51: #{patch_unembed_pallas.1} parent=35 // pred_fallthru
                _
              // Predicated region
              $region59: #{patch_unembed_pallas.1} parent=35 // pred_check
                _
              $region60: #{patch_unembed_pallas.1} parent=35 // pred_check_branch
                %247 = sbr.rel target = $region62
              $region61: #{patch_unembed_pallas.1} parent=35 // pred_region
                _
              $region62: #{patch_unembed_pallas.1} parent=35 // pred_fallthru
                _
            $region36: #{patch_unembed_pallas.1} parent=31 // pred_fallthru
              _
            // Predicated region
            $region37: #{patch_unembed_pallas.1} parent=31 // pred_check
              _
            $region38: #{patch_unembed_pallas.1} parent=31 // pred_check_branch
              %209 = sbr.rel target = $region40
            $region39: #{patch_unembed_pallas.1} parent=31 // pred_region
              %s211 = ssub.s32 256, 1
              loop: start=0, step=1, limit=1
              $region41: #{patch_unembed_pallas.1} parent=39 // loop_pre_header
                _
              $region42: #{patch_unembed_pallas.1} parent=39 // loop_header
                %s213 = sphi 0, %s217
                %p214 = scmp.ge.s32.totalorder %s213, 1
                %s218 = sphi %s196, %s196
                %s219 = sphi %s203, %s203
              $region43: #{patch_unembed_pallas.1} parent=39 // loop_header_branch
                %216 = sbr.rel (%p214) target = $region47
              $region44: #{patch_unembed_pallas.1} parent=39 // loop_body
                %v220 = vld [vmem:[%s218] sm:%s211]
                %221 = vst [vmem:[%s219] sm:%s211] %v220
                %v222 = vld [vmem:[%s218 + $0x8] sm:%s211]
                %223 = vst [vmem:[%s219 + $0x10] sm:%s211] %v222
                %v224 = vld [vmem:[%s218 + $0x10] sm:%s211]
                %225 = vst [vmem:[%s219 + $0x20] sm:%s211] %v224
                %v226 = vld [vmem:[%s218 + $0x18] sm:%s211]
                %227 = vst [vmem:[%s219 + $0x30] sm:%s211] %v226
              $region45: #{patch_unembed_pallas.1} parent=39 // loop_footer
                %s217 = sadd.s32 1, %s213
              $region46: #{patch_unembed_pallas.1} parent=39 // loop_footer_branch
                %212 = sbr.rel target = $region42
              $region47: #{patch_unembed_pallas.1} parent=39 // loop_exit
                _
            $region40: #{patch_unembed_pallas.1} parent=31 // pred_fallthru
              _
          $region32: #{patch_unembed_pallas.1} parent=27 // pred_fallthru
            _
          %248 = vnop
        $region28: #{patch_unembed_pallas.1} parent=23 // pred_fallthru
          _
      $region24: #{patch_unembed_pallas.1} parent=5 // pred_fallthru
        _
      %p249 = scmp.le.s32.totalorder 2, %s7
      // Predicated region
      $region63: #{patch_unembed_pallas.1} parent=5 // pred_check
        %p250 = pneg %p249
      $region64: #{patch_unembed_pallas.1} parent=5 // pred_check_branch
        %252 = sbr.rel (%p250) target = $region66
      $region65: #{patch_unembed_pallas.1} parent=5 // pred_region
        %s253 = ssub.s32 %s7, 2
        // Predicated region
        $region67: #{patch_unembed_pallas.1} parent=65 // pred_check
          %p254 = pneg %p78
        $region68: #{patch_unembed_pallas.1} parent=65 // pred_check_branch
          %256 = sbr.rel (%p254) target = $region70
        $region69: #{patch_unembed_pallas.1} parent=65 // pred_region
          %s257 = sand.u32 %s63, 1
          %s258 = sand.u32 %s63, 1
          %s259 = smul.addr %s258, 32
          %s260 = scalar_lea.vmem [#allocation2], %s259
        $region70: #{patch_unembed_pallas.1} parent=65 // pred_fallthru
          _
      $region66: #{patch_unembed_pallas.1} parent=5 // pred_fallthru
        _
    $region6: #{patch_unembed_pallas.1} parent=1 // loop_footer
      %s11 = sadd.s32 1, %s7
    $region7: #{patch_unembed_pallas.1} parent=1 // loop_footer_branch
      %6 = sbr.rel target = $region3
    $region8: #{patch_unembed_pallas.1} parent=1 // loop_exit
      _

</llo_original>
